<compile_context>
chip_gen: v5e
topology: v5e:2x2
jax: 0.10.0
libtpu: 0.0.40
codegen_flags: <defaults>
</compile_context>

<pallas_src>
import math

import jax
import jax.numpy as jnp
from jax.experimental import pallas as pl
from jax.experimental.pallas import tpu as pltpu


def _score_kernel(hb_ref, candi_ref, mask_ref, wc_ref, ws_ref, o_ref):
    # hb_ref:    (1, 1, H)   f32   -- precomputed hidden @ Wh^T + b
    # candi_ref: (1, TC, Di) bf16
    # mask_ref:  (1, 1, TC)  int32
    # wc_ref:    (Di, H)     bf16
    # ws_ref:    (1, H)      f32
    # o_ref:     (1, 1, TC)  f32
    c = candi_ref[0]                                                 # (TC, Di)

    # Candidate half of the split concat-Linear: single MXU matmul, f32 accum.
    t = jnp.dot(c, wc_ref[...], preferred_element_type=jnp.float32)  # (TC, H)
    t = jnp.tanh(t + hb_ref[0])                                      # + (1, H)

    # score Linear (H -> 1, no bias) as weighted lane reduction (XLU, not MXU).
    s = jnp.sum(t * ws_ref[...], axis=-1)                            # (TC,)

    # masked_fill_(~mask, -1e12); padded rows carry mask == 0.
    s = jnp.where(mask_ref[0, 0] != 0, s, jnp.float32(-1.0e12))
    o_ref[0, 0, :] = s


def _pick_candidate_tile(C, Di):
    """Largest 128-multiple tile (<=512) that keeps bf16 double-buffering small."""
    budget = 8 * 1024 * 1024          # bytes for 2x candi buffers (bf16)
    tc = 512
    while tc > 128 and 2 * tc * Di * 2 > budget:
        tc //= 2
    c128 = 128 * pl.cdiv(C, 128)      # don't use a wider tile than C needs
    return min(tc, max(128, c128))


def score_forward(hidden, candi_embeddings, candi_mask, params):
    """hidden: (B,1,Dh) f32; candi: (B,C,Di) f32; candi_mask: (B,C) bool -> (B,C) f32."""
    B, _, Dh = hidden.shape
    _, C, Di = candi_embeddings.shape
    wh, wc, b, ws = params["wh"], params["wc"], params["b"], params["ws"]
    H = wh.shape[1]

    if candi_mask is None:
        candi_mask = jnp.ones((B, C), dtype=bool)

    # Hoisted hidden projection: (B,1,Dh) @ (Dh,H) + (1,H) -> (B,1,H), f32.
    hb = jnp.einsum("bod,dh->boh", hidden, wh,
                    preferred_element_type=jnp.float32) + b[None]

    # Tile / pad the candidate axis to a lane-dense multiple of 128.
    TC = _pick_candidate_tile(C, Di)
    C_pad = TC * pl.cdiv(C, TC)
    pad_c = C_pad - C

    candi_p = jnp.pad(candi_embeddings, ((0, 0), (0, pad_c), (0, 0)))
    candi_bf16 = candi_p.astype(jnp.bfloat16)
    wc_bf16 = wc.astype(jnp.bfloat16)
    mask_i = jnp.pad(candi_mask, ((0, 0), (0, pad_c))).astype(jnp.int32)
    mask_i = mask_i.reshape(B, 1, C_pad)

    grid = (B, C_pad // TC)

    cost = pl.CostEstimate(
        flops=2 * B * C_pad * Di * H + 2 * B * C_pad * H,
        transcendentals=B * C_pad * H,
        bytes_accessed=B * C_pad * Di * 2 + B * C_pad * 4 + Di * H * 2,
    )

    out = pl.pallas_call(
        _score_kernel,
        out_shape=jax.ShapeDtypeStruct((B, 1, C_pad), jnp.float32),
        grid_spec=pltpu.PrefetchScalarGridSpec(
            num_scalar_prefetch=0,
            grid=grid,
            in_specs=[
                pl.BlockSpec((1, 1, H), lambda bi, ci: (bi, 0, 0)),     # hb
                pl.BlockSpec((1, TC, Di), lambda bi, ci: (bi, ci, 0)),  # candi
                pl.BlockSpec((1, 1, TC), lambda bi, ci: (bi, 0, ci)),   # mask
                pl.BlockSpec((Di, H), lambda bi, ci: (0, 0)),           # Wc^T
                pl.BlockSpec((1, H), lambda bi, ci: (0, 0)),            # ws
            ],
            out_specs=pl.BlockSpec((1, 1, TC), lambda bi, ci: (bi, 0, ci)),
        ),
        compiler_params=pltpu.CompilerParams(
            dimension_semantics=("parallel", "parallel")),
        cost_estimate=cost,
    )(hb, candi_bf16, mask_i, wc_bf16, ws)

    return out.reshape(B, C_pad)[:, :C]


def init_score_params(key, input_size, hidden_size):
    """Deterministic init mimicking nn.Linear default (uniform +-1/sqrt(fan_in))."""
    Di, H = input_size, hidden_size
    Dh = hidden_size  # hidden-state feature dim (concat partner of candi embeddings)
    k_attn = 1.0 / math.sqrt(Dh + Di)
    k_score = 1.0 / math.sqrt(H)
    kw, kb, ks = jax.random.split(key, 3)
    # PyTorch attn.weight has shape (H, Dh+Di); column-split into hidden / candi parts.
    w_attn = jax.random.uniform(kw, (H, Dh + Di), jnp.float32, -k_attn, k_attn)
    b_attn = jax.random.uniform(kb, (H,), jnp.float32, -k_attn, k_attn)
    w_score = jax.random.uniform(ks, (1, H), jnp.float32, -k_score, k_score)
    return {
        "wh": jnp.transpose(w_attn[:, :Dh]),   # (Dh, H)
        "wc": jnp.transpose(w_attn[:, Dh:]),   # (Di, H)
        "b": b_attn.reshape(1, H),             # (1, H)
        "ws": w_score,                         # (1, H)
    }


def score_reference(hidden, candi_embeddings, candi_mask, params):
    """Pure-JAX f32 reference matching the PyTorch forward."""
    B, _, Dh = hidden.shape
    _, C, Di = candi_embeddings.shape
    h_rep = jnp.broadcast_to(hidden, (B, C, Dh))
    energy_in = jnp.concatenate([h_rep, candi_embeddings], axis=2)
    w_full = jnp.concatenate([params["wh"], params["wc"]], axis=0)  # (Dh+Di, H)
    t = jnp.tanh(energy_in @ w_full + params["b"][0])
    s = (t @ params["ws"].T)[..., 0]                                # (B, C)
    return jnp.where(candi_mask, s, -1.0e12)


if __name__ == "__main__":
    B, C = 2, 8
    input_size, hidden_size = 32, 32
    Dh, Di = hidden_size, input_size

    key = jax.random.PRNGKey(0)
    k_h, k_c, k_m, k_p = jax.random.split(key, 4)

    hidden = jax.random.normal(k_h, (B, 1, Dh), jnp.float32)
    candi = jax.random.normal(k_c, (B, C, Di), jnp.float32)
    candi_mask = jax.random.uniform(k_m, (B, C)) > 0.3  # bool mask with some False
    params = init_score_params(k_p, input_size, hidden_size)

    out = score_forward(hidden, candi, candi_mask, params)
    out = jax.block_until_ready(out)

    ref = score_reference(hidden, candi, candi_mask, params)
    assert out.shape == (B, C)
    # Tolerance loosened versus the pure-f32 version: candi / Wc stream in bf16
    # (f32 accumulation); tanh saturation keeps the error small.
    assert jnp.allclose(out, ref, atol=5e-2, rtol=5e-2), (out, ref)

    print("KERNEL_OK")
</pallas_src>

<mosaic_0001>
module attributes {stable_mosaic.version = 11 : i64} {
  func.func @_score_kernel(%arg0: i32, %arg1: i32, %arg2: memref<1x1x32xf32, #tpu.memory_space<vmem>>, %arg3: memref<1x128x32xbf16, #tpu.memory_space<vmem>>, %arg4: memref<1x1x128xi32, #tpu.memory_space<vmem>>, %arg5: memref<32x32xbf16, #tpu.memory_space<vmem>>, %arg6: memref<1x32xf32, #tpu.memory_space<vmem>>, %arg7: memref<1x1x128xf32, #tpu.memory_space<vmem>>) attributes {dimension_semantics = [#tpu.dimension_semantics<parallel>, #tpu.dimension_semantics<parallel>], iteration_bounds = array<i64: 2, 1>, scalar_prefetch = 0 : i64, scratch_operands = 0 : i64, tpu.core_type = #tpu.core_type<tc>, window_params = [{transform_indices = @transform_0, window_bounds = array<i64: 1, 1, 32>}, {transform_indices = @transform_1, window_bounds = array<i64: 1, 128, 32>}, {transform_indices = @transform_2, window_bounds = array<i64: 1, 1, 128>}, {pipeline_mode = #tpu.pipeline_mode<synchronous>, transform_indices = @transform_3, window_bounds = array<i64: 32, 32>}, {pipeline_mode = #tpu.pipeline_mode<synchronous>, transform_indices = @transform_4, window_bounds = array<i64: 1, 32>}, {transform_indices = @transform_5, window_bounds = array<i64: 1, 1, 128>}]} {
    %c0 = arith.constant 0 : index
    %c0_0 = arith.constant 0 : index
    %c0_1 = arith.constant 0 : index
    %0 = vector.load %arg3[%c0, %c0_0, %c0_1] : memref<1x128x32xbf16, #tpu.memory_space<vmem>>, vector<1x128x32xbf16>
    %1 = vector.shape_cast %0 : vector<1x128x32xbf16> to vector<128x32xbf16>
    %c0_2 = arith.constant 0 : index
    %c0_3 = arith.constant 0 : index
    %2 = vector.load %arg5[%c0_2, %c0_3] : memref<32x32xbf16, #tpu.memory_space<vmem>>, vector<32x32xbf16>
    %cst = arith.constant dense<0.000000e+00> : vector<128x32xf32>
    %3 = tpu.matmul %1, %2, %cst {dimension_numbers = #tpu.dot_dimension_numbers<[1], [0], [0], [1], [0, 0, 1, 1], [], []>} : vector<128x32xbf16>, vector<32x32xbf16>, vector<128x32xf32> -> vector<128x32xf32>
    %c0_4 = arith.constant 0 : index
    %c0_5 = arith.constant 0 : index
    %c0_6 = arith.constant 0 : index
    %4 = vector.load %arg2[%c0_4, %c0_5, %c0_6] : memref<1x1x32xf32, #tpu.memory_space<vmem>>, vector<1x1x32xf32>
    %5 = vector.shape_cast %4 : vector<1x1x32xf32> to vector<1x32xf32>
    %6 = vector.broadcast %5 : vector<1x32xf32> to vector<128x32xf32>
    %7 = arith.addf %3, %6 : vector<128x32xf32>
    %8 = math.tanh %7 : vector<128x32xf32>
    %c0_7 = arith.constant 0 : index
    %c0_8 = arith.constant 0 : index
    %9 = vector.load %arg6[%c0_7, %c0_8] : memref<1x32xf32, #tpu.memory_space<vmem>>, vector<1x32xf32>
    %10 = vector.broadcast %9 : vector<1x32xf32> to vector<128x32xf32>
    %11 = arith.mulf %8, %10 : vector<128x32xf32>
    %cst_9 = arith.constant dense<0.000000e+00> : vector<128xf32>
    %12 = vector.multi_reduction <add>, %11, %cst_9 [1] : vector<128x32xf32> to vector<128xf32>
    %c0_10 = arith.constant 0 : index
    %c0_11 = arith.constant 0 : index
    %c0_12 = arith.constant 0 : index
    %13 = vector.load %arg4[%c0_10, %c0_11, %c0_12] : memref<1x1x128xi32, #tpu.memory_space<vmem>>, vector<1x1x128xi32>
    %14 = vector.shape_cast %13 : vector<1x1x128xi32> to vector<128xi32>
    %c0_i32 = arith.constant 0 : i32
    %15 = vector.broadcast %c0_i32 : i32 to vector<128xi32>
    %16 = arith.cmpi ne, %14, %15 : vector<128xi32>
    %cst_13 = arith.constant -9.99999995E+11 : f32
    %17 = vector.broadcast %cst_13 : f32 to vector<128xf32>
    %18 = arith.select %16, %12, %17 : vector<128xi1>, vector<128xf32>
    %c0_14 = arith.constant 0 : index
    %c0_15 = arith.constant 0 : index
    %c0_16 = arith.constant 0 : index
    %19 = vector.load %arg7[%c0_14, %c0_15, %c0_16] : memref<1x1x128xf32, #tpu.memory_space<vmem>>, vector<1x1x128xf32>
    %20 = vector.shape_cast %19 : vector<1x1x128xf32> to vector<128xf32>
    %21 = vector.shape_cast %18 : vector<128xf32> to vector<1x1x128xf32>
    tpu.vector_store %arg7[%c0_14, %c0_15, %c0_16], %21 {strides = array<i32>} : memref<1x1x128xf32, #tpu.memory_space<vmem>>, vector<1x1x128xf32>,
    return
  }
  func.func @transform_0(%arg0: i32, %arg1: i32) -> (i32, i32, i32) {
    %c0_i32 = arith.constant 0 : i32
    %c0_i32_0 = arith.constant 0 : i32
    %c0_i32_1 = arith.constant 0 : i32
    return %arg0, %c0_i32, %c0_i32_0 : i32, i32, i32
  }
  func.func @transform_1(%arg0: i32, %arg1: i32) -> (i32, i32, i32) {
    %c0_i32 = arith.constant 0 : i32
    %c0_i32_0 = arith.constant 0 : i32
    return %arg0, %arg1, %c0_i32 : i32, i32, i32
  }
  func.func @transform_2(%arg0: i32, %arg1: i32) -> (i32, i32, i32) {
    %c0_i32 = arith.constant 0 : i32
    %c0_i32_0 = arith.constant 0 : i32
    return %arg0, %c0_i32, %arg1 : i32, i32, i32
  }
  func.func @transform_3(%arg0: i32, %arg1: i32) -> (i32, i32) {
    %c0_i32 = arith.constant 0 : i32
    %c0_i32_0 = arith.constant 0 : i32
    %c0_i32_1 = arith.constant 0 : i32
    return %c0_i32, %c0_i32_0 : i32, i32
  }
  func.func @transform_4(%arg0: i32, %arg1: i32) -> (i32, i32) {
    %c0_i32 = arith.constant 0 : i32
    %c0_i32_0 = arith.constant 0 : i32
    %c0_i32_1 = arith.constant 0 : i32
    return %c0_i32, %c0_i32_0 : i32, i32
  }
  func.func @transform_5(%arg0: i32, %arg1: i32) -> (i32, i32, i32) {
    %c0_i32 = arith.constant 0 : i32
    %c0_i32_0 = arith.constant 0 : i32
    return %arg0, %c0_i32, %arg1 : i32, i32, i32
  }
}

</mosaic_0001>

<llo_original>
// kernel: tpu_custom_call.1
$region0: #{tpu_custom_call.1}
  #allocation0 [shape = 'u32[]', space=smem, size = 0x4, offset = 0x4, fixed_abs, tag = 'smem constant byte address 0x4 - core index']
  #allocation1 [shape = 'u32[72,128]{1,0:T(1,128)}', space=vmem, size = 0x9000, scoped, tag = 'internal scratch']
  %s0 = inlined_call_operand.vmem [shape: f32[2,1,32], index: 0, kind: input, shape index: {}]
  %s1 = inlined_call_operand.vmem [shape: bf16[2,128,32], index: 1, kind: input, shape index: {}]
  %s2 = inlined_call_operand.vmem [shape: s32[2,1,128], index: 2, kind: input, shape index: {}]
  %s3 = inlined_call_operand.vmem [shape: bf16[32,32], index: 3, kind: input, shape index: {}]
  %s4 = inlined_call_operand.vmem [shape: f32[1,32], index: 4, kind: input, shape index: {}]
  %s5 = inlined_call_operand.hbm [shape: f32[2,1,128], index: 5, kind: output, shape index: {}]
  %s6 = sld [smem:[#allocation0]]
  $region53: #{tpu_custom_call.1} parent=0
    _
  %s8 = ssub.s32 1, %s6
  %s9 = scalar_select 0, %s8, %s6
  $region1: #{tpu_custom_call.1} parent=0
    #allocation2 [shape = 'u8[1024]{0}', space=vmem, size = 0x400, scoped, tag = 'output window, operand 0']
    #allocation3 [shape = 's32[2]{0}', space=sflag, size = 0x8, scoped, tag = 'scoped memory for tpu_custom_call.1']
    %10 = vsyncpa [#allocation3], 0
    %s11 = scalar_lea.sflag [#allocation3], 1
    %12 = vsyncpa %s11, 0
    loop: start=0, step=1, limit=4
    $region2: #{tpu_custom_call.1} parent=1 // loop_pre_header
      _
    $region3: #{tpu_custom_call.1} parent=1 // loop_header
      %s14 = sphi 0, %s18
      %p15 = scmp.ge.s32.totalorder %s14, 4
      %s21 = sphi 0, %s33
      %s22 = sphi 0, %s29
      %s23 = sphi 0, %s21
      %s24 = sphi 0, %s22
      %s25 = sphi 0, %s23
      %s26 = sphi 0, %s24
      %s36 = sphi 0, %s38
      %s39 = sphi 0, %s36
      %s40 = sphi 0, %s39
      %s56 = sphi 0, %s40
      %s64 = sphi 0, %s66
      %s67 = sphi 0, %s64
      %s68 = sphi 0, %s67
      %s84 = sphi 0, %s68
      %s92 = sphi 0, %s94
      %s95 = sphi 0, %s92
      %s96 = sphi 0, %s95
      %s112 = sphi 0, %s96
      %s116 = sphi 0, %s116
      %s118 = sphi 0, %s116
      %s119 = sphi 0, %s118
      %s133 = sphi 0, %s119
      %s137 = sphi 0, %s137
      %s139 = sphi 0, %s137
      %s140 = sphi 0, %s139
      %s154 = sphi 0, %s140
      %s162 = sphi 0, %s164
      %s165 = sphi 0, %s162
      %s166 = sphi 0, %s165
      %s182 = sphi 0, %s166
    $region4: #{tpu_custom_call.1} parent=1 // loop_header_branch
      %17 = sbr.rel (%p15) target = $region8
    $region5: #{tpu_custom_call.1} parent=1 // loop_body
      %s19 = ssub.s32 %s14, 1
      %s20 = ssub.s32 %s14, 2
      %s27 = sadd.s32 1, %s22
      %p28 = scmp.ge.s32.totalorder %s27, 1
      %s29 = scalar_select %p28, 0, %s27
      %s30 = sadd.s32 1, %s21
      %s31 = scalar_select %p28, %s30, %s21
      %p32 = scmp.ge.s32.totalorder %s31, 2
      %s33 = scalar_select %p32, 0, %s31
      %s34 = ssub.s32 %s21, %s33
      %p35 = scmp.eq.s32.totalorder %s34, 0
      %s37 = sadd.s32 %s36, 1
      %s38 = scalar_select %p35, %s36, %s37
      %p41 = pneg %p35
      %p42 = scmp.eq.s32.totalorder %s14, 1
      %p43 = por %p41, %p42
      %p44 = scmp.ne.s32.totalorder %s36, %s39
      %p45 = scmp.eq.s32.totalorder %s14, 0
      %p46 = por %p44, %p45
      %p47 = scmp.ne.s32.totalorder %s36, %s39
      %p48 = scmp.eq.s32.totalorder %s19, 1
      %p49 = por %p47, %p48
      %p50 = scmp.ne.s32.totalorder %s39, %s40
      %p51 = scmp.eq.s32.totalorder %s19, 0
      %p52 = por %p50, %p51
      %p53 = scmp.ne.s32.totalorder %s39, %s40
      %p54 = scmp.eq.s32.totalorder %s20, 1
      %p55 = por %p53, %p54
      %p57 = scmp.ne.s32.totalorder %s40, %s56
      %p58 = scmp.eq.s32.totalorder %s20, 0
      %p59 = por %p57, %p58
      %s60 = ssub.s32 %s21, %s33
      %s61 = ssub.s32 %s22, %s29
      %s62 = sor.u32 %s60, %s61
      %p63 = scmp.eq.s32.totalorder %s62, 0
      %s65 = sadd.s32 %s64, 1
      %s66 = scalar_select %p63, %s64, %s65
      %p69 = pneg %p63
      %p70 = scmp.eq.s32.totalorder %s14, 1
      %p71 = por %p69, %p70
      %p72 = scmp.ne.s32.totalorder %s64, %s67
      %p73 = scmp.eq.s32.totalorder %s14, 0
      %p74 = por %p72, %p73
      %p75 = scmp.ne.s32.totalorder %s64, %s67
      %p76 = scmp.eq.s32.totalorder %s19, 1
      %p77 = por %p75, %p76
      %p78 = scmp.ne.s32.totalorder %s67, %s68
      %p79 = scmp.eq.s32.totalorder %s19, 0
      %p80 = por %p78, %p79
      %p81 = scmp.ne.s32.totalorder %s67, %s68
      %p82 = scmp.eq.s32.totalorder %s20, 1
      %p83 = por %p81, %p82
      %p85 = scmp.ne.s32.totalorder %s68, %s84
      %p86 = scmp.eq.s32.totalorder %s20, 0
      %p87 = por %p85, %p86
      %s88 = ssub.s32 %s21, %s33
      %s89 = ssub.s32 %s22, %s29
      %s90 = sor.u32 %s88, %s89
      %p91 = scmp.eq.s32.totalorder %s90, 0
      %s93 = sadd.s32 %s92, 1
      %s94 = scalar_select %p91, %s92, %s93
      %p97 = pneg %p91
      %p98 = scmp.eq.s32.totalorder %s14, 1
      %p99 = por %p97, %p98
      %p100 = scmp.ne.s32.totalorder %s92, %s95
      %p101 = scmp.eq.s32.totalorder %s14, 0
      %p102 = por %p100, %p101
      %p103 = scmp.ne.s32.totalorder %s92, %s95
      %p104 = scmp.eq.s32.totalorder %s19, 1
      %p105 = por %p103, %p104
      %p106 = scmp.ne.s32.totalorder %s95, %s96
      %p107 = scmp.eq.s32.totalorder %s19, 0
      %p108 = por %p106, %p107
      %p109 = scmp.ne.s32.totalorder %s95, %s96
      %p110 = scmp.eq.s32.totalorder %s20, 1
      %p111 = por %p109, %p110
      %p113 = scmp.ne.s32.totalorder %s96, %s112
      %p114 = scmp.eq.s32.totalorder %s20, 0
      %p115 = por %p113, %p114
      %s117 = sadd.s32 %s116, 1
      %p120 = scmp.eq.s32.totalorder %s14, 1
      %p121 = scmp.ne.s32.totalorder %s116, %s118
      %p122 = scmp.eq.s32.totalorder %s14, 0
      %p123 = por %p121, %p122
      %p124 = scmp.ne.s32.totalorder %s116, %s118
      %p125 = scmp.eq.s32.totalorder %s19, 1
      %p126 = por %p124, %p125
      %p127 = scmp.ne.s32.totalorder %s118, %s119
      %p128 = scmp.eq.s32.totalorder %s19, 0
      %p129 = por %p127, %p128
      %p130 = scmp.ne.s32.totalorder %s118, %s119
      %p131 = scmp.eq.s32.totalorder %s20, 1
      %p132 = por %p130, %p131
      %p134 = scmp.ne.s32.totalorder %s119, %s133
      %p135 = scmp.eq.s32.totalorder %s20, 0
      %p136 = por %p134, %p135
      %s138 = sadd.s32 %s137, 1
      %p141 = scmp.eq.s32.totalorder %s14, 1
      %p142 = scmp.ne.s32.totalorder %s137, %s139
      %p143 = scmp.eq.s32.totalorder %s14, 0
      %p144 = por %p142, %p143
      %p145 = scmp.ne.s32.totalorder %s137, %s139
      %p146 = scmp.eq.s32.totalorder %s19, 1
      %p147 = por %p145, %p146
      %p148 = scmp.ne.s32.totalorder %s139, %s140
      %p149 = scmp.eq.s32.totalorder %s19, 0
      %p150 = por %p148, %p149
      %p151 = scmp.ne.s32.totalorder %s139, %s140
      %p152 = scmp.eq.s32.totalorder %s20, 1
      %p153 = por %p151, %p152
      %p155 = scmp.ne.s32.totalorder %s140, %s154
      %p156 = scmp.eq.s32.totalorder %s20, 0
      %p157 = por %p155, %p156
      %s158 = ssub.s32 %s21, %s33
      %s159 = ssub.s32 %s22, %s29
      %s160 = sor.u32 %s158, %s159
      %p161 = scmp.eq.s32.totalorder %s160, 0
      %s163 = sadd.s32 %s162, 1
      %s164 = scalar_select %p161, %s162, %s163
      %p167 = pneg %p161
      %p168 = scmp.eq.s32.totalorder %s14, 1
      %p169 = por %p167, %p168
      %p170 = scmp.ne.s32.totalorder %s162, %s165
      %p171 = scmp.eq.s32.totalorder %s14, 0
      %p172 = por %p170, %p171
      %p173 = scmp.ne.s32.totalorder %s162, %s165
      %p174 = scmp.eq.s32.totalorder %s19, 1
      %p175 = por %p173, %p174
      %p176 = scmp.ne.s32.totalorder %s165, %s166
      %p177 = scmp.eq.s32.totalorder %s19, 0
      %p178 = por %p176, %p177
      %p179 = scmp.ne.s32.totalorder %s165, %s166
      %p180 = scmp.eq.s32.totalorder %s20, 1
      %p181 = por %p179, %p180
      %p183 = scmp.ne.s32.totalorder %s166, %s182
      %p184 = scmp.eq.s32.totalorder %s20, 0
      %p185 = por %p183, %p184
      %p186 = scmp.le.s32.totalorder 1, %s14
      %p187 = scmp.lt.s32.totalorder %s14, 3
      %p188 = pnand %p186, %p187
      %p189 = pneg %p188
      // Predicated region
      $region9: #{tpu_custom_call.1} parent=5 // pred_check
        _
      $region10: #{tpu_custom_call.1} parent=5 // pred_check_branch
        %191 = sbr.rel (%p188) target = $region12
      $region11: #{tpu_custom_call.1} parent=5 // pred_region
        %s192 = ssub.s32 %s14, 1
        // Predicated region
        $region13: #{tpu_custom_call.1} parent=11 // pred_check
          %p193 = pneg %p129
        $region14: #{tpu_custom_call.1} parent=11 // pred_check_branch
          %195 = sbr.rel (%p193) target = $region16
        $region15: #{tpu_custom_call.1} parent=11 // pred_region
          _
        $region16: #{tpu_custom_call.1} parent=11 // pred_fallthru
          _
        // Predicated region
        $region17: #{tpu_custom_call.1} parent=11 // pred_check
          %p196 = pneg %p150
        $region18: #{tpu_custom_call.1} parent=11 // pred_check_branch
          %198 = sbr.rel (%p196) target = $region20
        $region19: #{tpu_custom_call.1} parent=11 // pred_region
          _
        $region20: #{tpu_custom_call.1} parent=11 // pred_fallthru
          _
      $region12: #{tpu_custom_call.1} parent=5 // pred_fallthru
        _
      %p199 = scmp.lt.s32.totalorder %s14, 2
      // Predicated region
      $region21: #{tpu_custom_call.1} parent=5 // pred_check
        %p200 = pneg %p199
      $region22: #{tpu_custom_call.1} parent=5 // pred_check_branch
        %202 = sbr.rel (%p200) target = $region24
      $region23: #{tpu_custom_call.1} parent=5 // pred_region
        // Predicated region
        $region25: #{tpu_custom_call.1} parent=23 // pred_check
          %p203 = pneg %p46
        $region26: #{tpu_custom_call.1} parent=23 // pred_check_branch
          %205 = sbr.rel (%p203) target = $region28
        $region27: #{tpu_custom_call.1} parent=23 // pred_region
          %p206 = scmp.lt.s32.totalorder %s21, 1
          %s207 = scalar_select %p206, %s21, 1
          %s208 = scalar_lea.vmem %s0, %s207
        $region28: #{tpu_custom_call.1} parent=23 // pred_fallthru
          _
        // Predicated region
        $region29: #{tpu_custom_call.1} parent=23 // pred_check
          %p209 = pneg %p74
        $region30: #{tpu_custom_call.1} parent=23 // pred_check_branch
          %211 = sbr.rel (%p209) target = $region32
        $region31: #{tpu_custom_call.1} parent=23 // pred_region
          %s212 = smul.u32 16, %s22
          %p213 = scmp.lt.s32.totalorder %s21, 1
          %s214 = scalar_select %p213, %s21, 1
          %p215 = scmp.lt.s32.totalorder %s212, 15
          %s216 = scalar_select %p215, %s212, 15
          %s217 = smul.addr %s214, 16
          %s218 = sadd.s32 %s216, %s217
          %s219 = smul.addr %s218, 4
          %s220 = scalar_lea.vmem %s1, %s219
          %s221 = smul.u32 16, %s22
        $region32: #{tpu_custom_call.1} parent=23 // pred_fallthru
          _
        // Predicated region
        $region33: #{tpu_custom_call.1} parent=23 // pred_check
          %p222 = pneg %p102
        $region34: #{tpu_custom_call.1} parent=23 // pred_check_branch
          %224 = sbr.rel (%p222) target = $region36
        $region35: #{tpu_custom_call.1} parent=23 // pred_region
          %p225 = scmp.lt.s32.totalorder %s21, 1
          %s226 = scalar_select %p225, %s21, 1
          %p227 = scmp.lt.s32.totalorder %s22, 0
          %s228 = scalar_select %p227, %s22, 0
          %s229 = sadd.s32 %s228, %s226
          %s230 = scalar_lea.vmem %s2, %s229
        $region36: #{tpu_custom_call.1} parent=23 // pred_fallthru
          _
      $region24: #{tpu_custom_call.1} parent=5 // pred_fallthru
        _
      %p231 = scmp.le.s32.totalorder 1, %s14
      %p232 = scmp.lt.s32.totalorder %s14, 3
      %p233 = pnand %p231, %p232
      %p234 = pneg %p233
      // Predicated region
      $region37: #{tpu_custom_call.1} parent=5 // pred_check
        _
      $region38: #{tpu_custom_call.1} parent=5 // pred_check_branch
        %236 = sbr.rel (%p233) target = $region40
      $region39: #{tpu_custom_call.1} parent=5 // pred_region
        %s237 = ssub.s32 %s14, 1
        %p238 = scmp.lt.s32.totalorder %s23, 1
        %s239 = scalar_select %p238, %s23, 1
        %s240 = scalar_lea.vmem %s0, %s239
        %p241 = pneg %p52
        %p242 = pneg %p49
        %s243 = smul.u32 16, %s24
        %p244 = scmp.lt.s32.totalorder %s23, 1
        %s245 = scalar_select %p244, %s23, 1
        %p246 = scmp.lt.s32.totalorder %s243, 15
        %s247 = scalar_select %p246, %s243, 15
        %s248 = smul.addr %s245, 16
        %s249 = sadd.s32 %s247, %s248
        %s250 = smul.addr %s249, 4
        %s251 = scalar_lea.vmem %s1, %s250
        %p252 = pneg %p80
        %p253 = pneg %p77
        %p254 = scmp.lt.s32.totalorder %s23, 1
        %s255 = scalar_select %p254, %s23, 1
        %p256 = scmp.lt.s32.totalorder %s24, 0
        %s257 = scalar_select %p256, %s24, 0
        %s258 = sadd.s32 %s257, %s255
        %s259 = scalar_lea.vmem %s2, %s258
        %p260 = pneg %p108
        %p261 = pneg %p105
        %p262 = pneg %p129
        %p263 = pneg %p126
        %p264 = pneg %p150
        %p265 = pneg %p147
        %p266 = pneg %p178
        %p267 = pneg %p175
        %s268 = sand.u32 %s165, 1
        %s269 = scalar_lea.sflag [#allocation3], %s268
        %s270 = sand.u32 %s165, 1
        %s271 = scalar_lea.vmem [#allocation2], %s270
        %p272 = scmp.lt.s32.totalorder %s23, 1
        %s273 = scalar_select %p272, %s23, 1
        %s274 = scalar_lea.vmem %s0, %s273
        %s275 = smul.u32 16, %s24
        %p276 = scmp.lt.s32.totalorder %s23, 1
        %s277 = scalar_select %p276, %s23, 1
        %p278 = scmp.lt.s32.totalorder %s275, 15
        %s279 = scalar_select %p278, %s275, 15
        %s280 = smul.addr %s277, 16
        %s281 = sadd.s32 %s279, %s280
        %s282 = smul.addr %s281, 4
        %s283 = scalar_lea.vmem %s1, %s282
        %s284 = smul.u32 16, %s24
        %p285 = scmp.lt.s32.totalorder %s23, 1
        %s286 = scalar_select %p285, %s23, 1
        %p287 = scmp.lt.s32.totalorder %s24, 0
        %s288 = scalar_select %p287, %s24, 0
        %s289 = sadd.s32 %s288, %s286
        %s290 = scalar_lea.vmem %s2, %s289
        %v292 = vld [vmem:[%s283] sm:$0xf]
        %v293 = vld [vmem:[%s283 + $0x4] sm:$0xf]
        %v294 = vld [vmem:[%s283 + $0x8] sm:$0xf]
        %v295 = vld [vmem:[%s283 + $0xc] sm:$0xf]
        %v296 = vld [vmem:[%s283 + $0x10] sm:$0xf]
        %v297 = vld [vmem:[%s283 + $0x14] sm:$0xf]
        %v298 = vld [vmem:[%s283 + $0x18] sm:$0xf]
        %v299 = vld [vmem:[%s283 + $0x1c] sm:$0xf]
        %v300 = vld [vmem:[%s283 + $0x20] sm:$0xf]
        %v301 = vld [vmem:[%s283 + $0x24] sm:$0xf]
        %v302 = vld [vmem:[%s283 + $0x28] sm:$0xf]
        %v303 = vld [vmem:[%s283 + $0x2c] sm:$0xf]
        %v304 = vld [vmem:[%s283 + $0x30] sm:$0xf]
        %v305 = vld [vmem:[%s283 + $0x34] sm:$0xf]
        %v306 = vld [vmem:[%s283 + $0x38] sm:$0xf]
        %v307 = vld [vmem:[%s283 + $0x3c] sm:$0xf]
        %v308 = vld [vmem:[%s3] sm:$0xf]
        %v309 = vld [vmem:[%s3 + $0x4] sm:$0xf]
        %v310 = vld [vmem:[%s3 + $0x8] sm:$0xf]
        %v311 = vld [vmem:[%s3 + $0xc] sm:$0xf]
        %v312 = vld [vmem:[%s274] sm:$0x1]
        %v314 = vperm.slane %v312, 0
        %v332 = vunpack.c.l.b16 %v292
        %v333 = vunpack.c.l.b16 %v293
        %v334 = vunpack.c.l.b16 %v294
        %v335 = vunpack.c.l.b16 %v295
        %v336 = vunpack.c.l.b16 %v296
        %v337 = vunpack.c.l.b16 %v297
        %v338 = vunpack.c.l.b16 %v298
        %v339 = vunpack.c.l.b16 %v299
        %v340 = vunpack.c.l.b16 %v300
        %v341 = vunpack.c.l.b16 %v301
        %v342 = vunpack.c.l.b16 %v302
        %v343 = vunpack.c.l.b16 %v303
        %v344 = vunpack.c.l.b16 %v304
        %v345 = vunpack.c.l.b16 %v305
        %v346 = vunpack.c.l.b16 %v306
        %v347 = vunpack.c.l.b16 %v307
        %v348 = vpack.c.b16 %v333, %v332
        %v349 = vpack.c.b16 %v335, %v334
        %v350 = vpack.c.b16 %v337, %v336
        %v351 = vpack.c.b16 %v339, %v338
        %v352 = vpack.c.b16 %v341, %v340
        %v353 = vpack.c.b16 %v343, %v342
        %v354 = vpack.c.b16 %v345, %v344
        %v355 = vpack.c.b16 %v347, %v346
        %v360 = vunpack.c.l.b16 %v308
        %v361 = vunpack.c.l.b16 %v309
        %v362 = vunpack.c.l.b16 %v310
        %v363 = vunpack.c.l.b16 %v311
        %v364 = vpack.c.b16 %v361, %v360
        %v365 = vpack.c.b16 %v363, %v362
        %vm368 = vcmask 261120
        %v370 = vsel %vm368, %v348, 0
        %v373 = vsel %vm368, %v349, 0
        %v376 = vsel %vm368, %v350, 0
        %v379 = vsel %vm368, %v351, 0
        %v382 = vsel %vm368, %v352, 0
        %v385 = vsel %vm368, %v353, 0
        %v388 = vsel %vm368, %v354, 0
        %v391 = vsel %vm368, %v355, 0
        %393 = vmatpush.bf16.msra.mxu0 0
        %394 = vmatpush.bf16.msra.mxu0 0
        %395 = vmatpush.bf16.msra.mxu0 0
        %396 = vmatpush.bf16.msra.mxu0 0
        %397 = vmatpush.bf16.msra.mxu0 0
        %398 = vmatpush.bf16.msra.mxu0 0
        %399 = vmatpush.bf16.msra.mxu0 %v365
        %400 = vmatpush.bf16.msra.mxu0 %v364
        %401 = vmatmul.bf16.gmra.mxu0 %v370
        %v402 = vpop.f32.mrf.mxu0
        %v403 = vadd.f32 %v314, %v402
        %v404 = vpop.f32.mrf.mxu0
        %v405 = vadd.f32 %v314, %v404
        %406 = vmatmul.bf16.gmra.mxu0 %v373
        %v407 = vpop.f32.mrf.mxu0
        %v408 = vadd.f32 %v314, %v407
        %v409 = vpop.f32.mrf.mxu0
        %v410 = vadd.f32 %v314, %v409
        %411 = vmatmul.bf16.gmra.mxu0 %v376
        %v412 = vpop.f32.mrf.mxu0
        %v413 = vadd.f32 %v314, %v412
        %v414 = vpop.f32.mrf.mxu0
        %v415 = vadd.f32 %v314, %v414
        %416 = vmatmul.bf16.gmra.mxu0 %v379
        %v417 = vpop.f32.mrf.mxu0
        %v418 = vadd.f32 %v314, %v417
        %v419 = vpop.f32.mrf.mxu0
        %v420 = vadd.f32 %v314, %v419
        %421 = vmatmul.bf16.gmra.mxu0 %v382
        %v422 = vpop.f32.mrf.mxu0
        %v423 = vadd.f32 %v314, %v422
        %v424 = vpop.f32.mrf.mxu0
        %v425 = vadd.f32 %v314, %v424
        %426 = vmatmul.bf16.gmra.mxu0 %v385
        %v427 = vpop.f32.mrf.mxu0
        %v428 = vadd.f32 %v314, %v427
        %v429 = vpop.f32.mrf.mxu0
        %v430 = vadd.f32 %v314, %v429
        %431 = vmatmul.bf16.gmra.mxu0 %v388
        %v432 = vpop.f32.mrf.mxu0
        %v433 = vadd.f32 %v314, %v432
        %v434 = vpop.f32.mrf.mxu0
        %v435 = vadd.f32 %v314, %v434
        %436 = vmatmul.bf16.gmra.mxu0 %v391
        %v437 = vpop.f32.mrf.mxu0
        %v438 = vadd.f32 %v314, %v437
        %v439 = vpop.f32.mrf.mxu0
        %v440 = vadd.f32 %v314, %v439
        %441 = vdwg.mxu0
        %v442 = vtanh.pop %v403
        %v443 = vtanh.pop %v405
        %v444 = vtanh.pop %v408
        %v445 = vtanh.pop %v410
        %v446 = vtanh.pop %v413
        %v447 = vtanh.pop %v415
        %v448 = vtanh.pop %v418
        %v449 = vtanh.pop %v420
        %v450 = vtanh.pop %v423
        %v451 = vtanh.pop %v425
        %v452 = vtanh.pop %v428
        %v453 = vtanh.pop %v430
        %v454 = vtanh.pop %v433
        %v455 = vtanh.pop %v435
        %v456 = vtanh.pop %v438
        %v457 = vtanh.pop %v440
        %v458 = vld [vmem:[%s4] sm:$0x1]
        %v460 = vperm.slane %v458, 0
        %v462 = vmul.f32 %v442, %v460
        %v463 = vmul.f32 %v443, %v460
        %v464 = vmul.f32 %v444, %v460
        %v465 = vmul.f32 %v445, %v460
        %v466 = vmul.f32 %v446, %v460
        %v467 = vmul.f32 %v447, %v460
        %v468 = vmul.f32 %v448, %v460
        %v469 = vmul.f32 %v449, %v460
        %v470 = vmul.f32 %v450, %v460
        %v471 = vmul.f32 %v451, %v460
        %v472 = vmul.f32 %v452, %v460
        %v473 = vmul.f32 %v453, %v460
        %v474 = vmul.f32 %v454, %v460
        %v475 = vmul.f32 %v455, %v460
        %v476 = vmul.f32 %v456, %v460
        %v477 = vmul.f32 %v457, %v460
        %v478 = vsel %vm368, %v462, 0.0
        %479 = vadd.xlane.f32.xlu0 %v478
        %v480 = vpop.xlane.xlu0 %479
        %v481 = vsel %vm368, %v463, 0.0
        %482 = vadd.xlane.f32.xlu0 %v481
        %v483 = vpop.xlane.xlu0 %482
        %v484 = vsel %vm368, %v464, 0.0
        %485 = vadd.xlane.f32.xlu0 %v484
        %v486 = vpop.xlane.xlu0 %485
        %v487 = vsel %vm368, %v465, 0.0
        %488 = vadd.xlane.f32.xlu0 %v487
        %v489 = vpop.xlane.xlu0 %488
        %v490 = vsel %vm368, %v466, 0.0
        %491 = vadd.xlane.f32.xlu0 %v490
        %v492 = vpop.xlane.xlu0 %491
        %v493 = vsel %vm368, %v467, 0.0
        %494 = vadd.xlane.f32.xlu0 %v493
        %v495 = vpop.xlane.xlu0 %494
        %v496 = vsel %vm368, %v468, 0.0
        %497 = vadd.xlane.f32.xlu0 %v496
        %v498 = vpop.xlane.xlu0 %497
        %v499 = vsel %vm368, %v469, 0.0
        %500 = vadd.xlane.f32.xlu0 %v499
        %v501 = vpop.xlane.xlu0 %500
        %v502 = vsel %vm368, %v470, 0.0
        %503 = vadd.xlane.f32.xlu0 %v502
        %v504 = vpop.xlane.xlu0 %503
        %v505 = vsel %vm368, %v471, 0.0
        %506 = vadd.xlane.f32.xlu0 %v505
        %v507 = vpop.xlane.xlu0 %506
        %v508 = vsel %vm368, %v472, 0.0
        %509 = vadd.xlane.f32.xlu0 %v508
        %v510 = vpop.xlane.xlu0 %509
        %v511 = vsel %vm368, %v473, 0.0
        %512 = vadd.xlane.f32.xlu0 %v511
        %v513 = vpop.xlane.xlu0 %512
        %v514 = vsel %vm368, %v474, 0.0
        %515 = vadd.xlane.f32.xlu0 %v514
        %v516 = vpop.xlane.xlu0 %515
        %v517 = vsel %vm368, %v475, 0.0
        %518 = vadd.xlane.f32.xlu0 %v517
        %v519 = vpop.xlane.xlu0 %518
        %v520 = vsel %vm368, %v476, 0.0
        %521 = vadd.xlane.f32.xlu0 %v520
        %v522 = vpop.xlane.xlu0 %521
        %v523 = vsel %vm368, %v477, 0.0
        %524 = vadd.xlane.f32.xlu0 %v523
        %v525 = vpop.xlane.xlu0 %524
        %v526 = vld [vmem:[%s290] sm:$0x1]
        %vm527 = vcmp.ne.s32.totalorder %v526, 0
        %v544 = vperm.slane %v480, 0
        %v545 = vperm.slane %v480, 1
        %v546 = vperm.slane %v480, 2
        %v547 = vperm.slane %v480, 3
        %v548 = vperm.slane %v480, 4
        %v549 = vperm.slane %v480, 5
        %v550 = vperm.slane %v480, 6
        %v551 = vperm.slane %v480, 7
        %v552 = vperm.slane %v483, 0
        %v553 = vperm.slane %v483, 1
        %v554 = vperm.slane %v483, 2
        %v555 = vperm.slane %v483, 3
        %v556 = vperm.slane %v483, 4
        %v557 = vperm.slane %v483, 5
        %v558 = vperm.slane %v483, 6
        %v559 = vperm.slane %v483, 7
        %v560 = vperm.slane %v486, 0
        %v561 = vperm.slane %v486, 1
        %v562 = vperm.slane %v486, 2
        %v563 = vperm.slane %v486, 3
        %v564 = vperm.slane %v486, 4
        %v565 = vperm.slane %v486, 5
        %v566 = vperm.slane %v486, 6
        %v567 = vperm.slane %v486, 7
        %v568 = vperm.slane %v489, 0
        %v569 = vperm.slane %v489, 1
        %v570 = vperm.slane %v489, 2
        %v571 = vperm.slane %v489, 3
        %v572 = vperm.slane %v489, 4
        %v573 = vperm.slane %v489, 5
        %v574 = vperm.slane %v489, 6
        %v575 = vperm.slane %v489, 7
        %v576 = vperm.slane %v492, 0
        %v577 = vperm.slane %v492, 1
        %v578 = vperm.slane %v492, 2
        %v579 = vperm.slane %v492, 3
        %v580 = vperm.slane %v492, 4
        %v581 = vperm.slane %v492, 5
        %v582 = vperm.slane %v492, 6
        %v583 = vperm.slane %v492, 7
        %v584 = vperm.slane %v495, 0
        %v585 = vperm.slane %v495, 1
        %v586 = vperm.slane %v495, 2
        %v587 = vperm.slane %v495, 3
        %v588 = vperm.slane %v495, 4
        %v589 = vperm.slane %v495, 5
        %v590 = vperm.slane %v495, 6
        %v591 = vperm.slane %v495, 7
        %v592 = vperm.slane %v498, 0
        %v593 = vperm.slane %v498, 1
        %v594 = vperm.slane %v498, 2
        %v595 = vperm.slane %v498, 3
        %v596 = vperm.slane %v498, 4
        %v597 = vperm.slane %v498, 5
        %v598 = vperm.slane %v498, 6
        %v599 = vperm.slane %v498, 7
        %v600 = vperm.slane %v501, 0
        %v601 = vperm.slane %v501, 1
        %v602 = vperm.slane %v501, 2
        %v603 = vperm.slane %v501, 3
        %v604 = vperm.slane %v501, 4
        %v605 = vperm.slane %v501, 5
        %v606 = vperm.slane %v501, 6
        %v607 = vperm.slane %v501, 7
        %v608 = vperm.slane %v504, 0
        %v609 = vperm.slane %v504, 1
        %v610 = vperm.slane %v504, 2
        %v611 = vperm.slane %v504, 3
        %v612 = vperm.slane %v504, 4
        %v613 = vperm.slane %v504, 5
        %v614 = vperm.slane %v504, 6
        %v615 = vperm.slane %v504, 7
        %v616 = vperm.slane %v507, 0
        %v617 = vperm.slane %v507, 1
        %v618 = vperm.slane %v507, 2
        %v619 = vperm.slane %v507, 3
        %v620 = vperm.slane %v507, 4
        %v621 = vperm.slane %v507, 5
        %v622 = vperm.slane %v507, 6
        %v623 = vperm.slane %v507, 7
        %v624 = vperm.slane %v510, 0
        %v625 = vperm.slane %v510, 1
        %v626 = vperm.slane %v510, 2
        %v627 = vperm.slane %v510, 3
        %v628 = vperm.slane %v510, 4
        %v629 = vperm.slane %v510, 5
        %v630 = vperm.slane %v510, 6
        %v631 = vperm.slane %v510, 7
        %v632 = vperm.slane %v513, 0
        %v633 = vperm.slane %v513, 1
        %v634 = vperm.slane %v513, 2
        %v635 = vperm.slane %v513, 3
        %v636 = vperm.slane %v513, 4
        %v637 = vperm.slane %v513, 5
        %v638 = vperm.slane %v513, 6
        %v639 = vperm.slane %v513, 7
        %v640 = vperm.slane %v516, 0
        %v641 = vperm.slane %v516, 1
        %v642 = vperm.slane %v516, 2
        %v643 = vperm.slane %v516, 3
        %v644 = vperm.slane %v516, 4
        %v645 = vperm.slane %v516, 5
        %v646 = vperm.slane %v516, 6
        %v647 = vperm.slane %v516, 7
        %v648 = vperm.slane %v519, 0
        %v649 = vperm.slane %v519, 1
        %v650 = vperm.slane %v519, 2
        %v651 = vperm.slane %v519, 3
        %v652 = vperm.slane %v519, 4
        %v653 = vperm.slane %v519, 5
        %v654 = vperm.slane %v519, 6
        %v655 = vperm.slane %v519, 7
        %v656 = vperm.slane %v522, 0
        %v657 = vperm.slane %v522, 1
        %v658 = vperm.slane %v522, 2
        %v659 = vperm.slane %v522, 3
        %v660 = vperm.slane %v522, 4
        %v661 = vperm.slane %v522, 5
        %v662 = vperm.slane %v522, 6
        %v663 = vperm.slane %v522, 7
        %v664 = vperm.slane %v525, 0
        %v665 = vperm.slane %v525, 1
        %v666 = vperm.slane %v525, 2
        %v667 = vperm.slane %v525, 3
        %v668 = vperm.slane %v525, 4
        %v669 = vperm.slane %v525, 5
        %v670 = vperm.slane %v525, 6
        %v671 = vperm.slane %v525, 7
        %672 = vst [vmem:[#allocation1] ss:$9 sm:$0xff] %v544
        %s673 = scalar_lea.vmem [#allocation1], 1
        %674 = vst [vmem:[%s673] ss:$9 sm:$0xff] %v545
        %s675 = scalar_lea.vmem [#allocation1], 2
        %676 = vst [vmem:[%s675] ss:$9 sm:$0xff] %v546
        %s677 = scalar_lea.vmem [#allocation1], 3
        %678 = vst [vmem:[%s677] ss:$9 sm:$0xff] %v547
        %s679 = scalar_lea.vmem [#allocation1], 4
        %680 = vst [vmem:[%s679] ss:$9 sm:$0xff] %v548
        %s681 = scalar_lea.vmem [#allocation1], 5
        %682 = vst [vmem:[%s681] ss:$9 sm:$0xff] %v549
        %s683 = scalar_lea.vmem [#allocation1], 6
        %684 = vst [vmem:[%s683] ss:$9 sm:$0xff] %v550
        %s685 = scalar_lea.vmem [#allocation1], 7
        %686 = vst [vmem:[%s685] ss:$9 sm:$0xff] %v551
        %v687 = vld [vmem:[#allocation1] sm:$0xff]
        %688 = vst [vmem:[#allocation1] ss:$9 sm:$0xff] %v552
        %689 = vst [vmem:[%s673] ss:$9 sm:$0xff] %v553
        %690 = vst [vmem:[%s675] ss:$9 sm:$0xff] %v554
        %691 = vst [vmem:[%s677] ss:$9 sm:$0xff] %v555
        %692 = vst [vmem:[%s679] ss:$9 sm:$0xff] %v556
        %693 = vst [vmem:[%s681] ss:$9 sm:$0xff] %v557
        %694 = vst [vmem:[%s683] ss:$9 sm:$0xff] %v558
        %695 = vst [vmem:[%s685] ss:$9 sm:$0xff] %v559
        %v696 = vld [vmem:[#allocation1] sm:$0xff]
        %697 = vst [vmem:[#allocation1] ss:$9 sm:$0xff] %v560
        %698 = vst [vmem:[%s673] ss:$9 sm:$0xff] %v561
        %699 = vst [vmem:[%s675] ss:$9 sm:$0xff] %v562
        %700 = vst [vmem:[%s677] ss:$9 sm:$0xff] %v563
        %701 = vst [vmem:[%s679] ss:$9 sm:$0xff] %v564
        %702 = vst [vmem:[%s681] ss:$9 sm:$0xff] %v565
        %703 = vst [vmem:[%s683] ss:$9 sm:$0xff] %v566
        %704 = vst [vmem:[%s685] ss:$9 sm:$0xff] %v567
        %v705 = vld [vmem:[#allocation1] sm:$0xff]
        %706 = vst [vmem:[#allocation1] ss:$9 sm:$0xff] %v568
        %707 = vst [vmem:[%s673] ss:$9 sm:$0xff] %v569
        %708 = vst [vmem:[%s675] ss:$9 sm:$0xff] %v570
        %709 = vst [vmem:[%s677] ss:$9 sm:$0xff] %v571
        %710 = vst [vmem:[%s679] ss:$9 sm:$0xff] %v572
        %711 = vst [vmem:[%s681] ss:$9 sm:$0xff] %v573
        %712 = vst [vmem:[%s683] ss:$9 sm:$0xff] %v574
        %713 = vst [vmem:[%s685] ss:$9 sm:$0xff] %v575
        %v714 = vld [vmem:[#allocation1] sm:$0xff]
        %715 = vst [vmem:[#allocation1] ss:$9 sm:$0xff] %v576
        %716 = vst [vmem:[%s673] ss:$9 sm:$0xff] %v577
        %717 = vst [vmem:[%s675] ss:$9 sm:$0xff] %v578
        %718 = vst [vmem:[%s677] ss:$9 sm:$0xff] %v579
        %719 = vst [vmem:[%s679] ss:$9 sm:$0xff] %v580
        %720 = vst [vmem:[%s681] ss:$9 sm:$0xff] %v581
        %721 = vst [vmem:[%s683] ss:$9 sm:$0xff] %v582
        %722 = vst [vmem:[%s685] ss:$9 sm:$0xff] %v583
        %v723 = vld [vmem:[#allocation1] sm:$0xff]
        %724 = vst [vmem:[#allocation1] ss:$9 sm:$0xff] %v584
        %725 = vst [vmem:[%s673] ss:$9 sm:$0xff] %v585
        %726 = vst [vmem:[%s675] ss:$9 sm:$0xff] %v586
        %727 = vst [vmem:[%s677] ss:$9 sm:$0xff] %v587
        %728 = vst [vmem:[%s679] ss:$9 sm:$0xff] %v588
        %729 = vst [vmem:[%s681] ss:$9 sm:$0xff] %v589
        %730 = vst [vmem:[%s683] ss:$9 sm:$0xff] %v590
        %731 = vst [vmem:[%s685] ss:$9 sm:$0xff] %v591
        %v732 = vld [vmem:[#allocation1] sm:$0xff]
        %733 = vst [vmem:[#allocation1] ss:$9 sm:$0xff] %v592
        %734 = vst [vmem:[%s673] ss:$9 sm:$0xff] %v593
        %735 = vst [vmem:[%s675] ss:$9 sm:$0xff] %v594
        %736 = vst [vmem:[%s677] ss:$9 sm:$0xff] %v595
        %737 = vst [vmem:[%s679] ss:$9 sm:$0xff] %v596
        %738 = vst [vmem:[%s681] ss:$9 sm:$0xff] %v597
        %739 = vst [vmem:[%s683] ss:$9 sm:$0xff] %v598
        %740 = vst [vmem:[%s685] ss:$9 sm:$0xff] %v599
        %v741 = vld [vmem:[#allocation1] sm:$0xff]
        %742 = vst [vmem:[#allocation1] ss:$9 sm:$0xff] %v600
        %743 = vst [vmem:[%s673] ss:$9 sm:$0xff] %v601
        %744 = vst [vmem:[%s675] ss:$9 sm:$0xff] %v602
        %745 = vst [vmem:[%s677] ss:$9 sm:$0xff] %v603
        %746 = vst [vmem:[%s679] ss:$9 sm:$0xff] %v604
        %747 = vst [vmem:[%s681] ss:$9 sm:$0xff] %v605
        %748 = vst [vmem:[%s683] ss:$9 sm:$0xff] %v606
        %749 = vst [vmem:[%s685] ss:$9 sm:$0xff] %v607
        %v750 = vld [vmem:[#allocation1] sm:$0xff]
        %751 = vst [vmem:[#allocation1] ss:$9 sm:$0xff] %v608
        %752 = vst [vmem:[%s673] ss:$9 sm:$0xff] %v609
        %753 = vst [vmem:[%s675] ss:$9 sm:$0xff] %v610
        %754 = vst [vmem:[%s677] ss:$9 sm:$0xff] %v611
        %755 = vst [vmem:[%s679] ss:$9 sm:$0xff] %v612
        %756 = vst [vmem:[%s681] ss:$9 sm:$0xff] %v613
        %757 = vst [vmem:[%s683] ss:$9 sm:$0xff] %v614
        %758 = vst [vmem:[%s685] ss:$9 sm:$0xff] %v615
        %v759 = vld [vmem:[#allocation1] sm:$0xff]
        %760 = vst [vmem:[#allocation1] ss:$9 sm:$0xff] %v616
        %761 = vst [vmem:[%s673] ss:$9 sm:$0xff] %v617
        %762 = vst [vmem:[%s675] ss:$9 sm:$0xff] %v618
        %763 = vst [vmem:[%s677] ss:$9 sm:$0xff] %v619
        %764 = vst [vmem:[%s679] ss:$9 sm:$0xff] %v620
        %765 = vst [vmem:[%s681] ss:$9 sm:$0xff] %v621
        %766 = vst [vmem:[%s683] ss:$9 sm:$0xff] %v622
        %767 = vst [vmem:[%s685] ss:$9 sm:$0xff] %v623
        %v768 = vld [vmem:[#allocation1] sm:$0xff]
        %769 = vst [vmem:[#allocation1] ss:$9 sm:$0xff] %v624
        %770 = vst [vmem:[%s673] ss:$9 sm:$0xff] %v625
        %771 = vst [vmem:[%s675] ss:$9 sm:$0xff] %v626
        %772 = vst [vmem:[%s677] ss:$9 sm:$0xff] %v627
        %773 = vst [vmem:[%s679] ss:$9 sm:$0xff] %v628
        %774 = vst [vmem:[%s681] ss:$9 sm:$0xff] %v629
        %775 = vst [vmem:[%s683] ss:$9 sm:$0xff] %v630
        %776 = vst [vmem:[%s685] ss:$9 sm:$0xff] %v631
        %v777 = vld [vmem:[#allocation1] sm:$0xff]
        %778 = vst [vmem:[#allocation1] ss:$9 sm:$0xff] %v632
        %779 = vst [vmem:[%s673] ss:$9 sm:$0xff] %v633
        %780 = vst [vmem:[%s675] ss:$9 sm:$0xff] %v634
        %781 = vst [vmem:[%s677] ss:$9 sm:$0xff] %v635
        %782 = vst [vmem:[%s679] ss:$9 sm:$0xff] %v636
        %783 = vst [vmem:[%s681] ss:$9 sm:$0xff] %v637
        %784 = vst [vmem:[%s683] ss:$9 sm:$0xff] %v638
        %785 = vst [vmem:[%s685] ss:$9 sm:$0xff] %v639
        %v786 = vld [vmem:[#allocation1] sm:$0xff]
        %787 = vst [vmem:[#allocation1] ss:$9 sm:$0xff] %v640
        %788 = vst [vmem:[%s673] ss:$9 sm:$0xff] %v641
        %789 = vst [vmem:[%s675] ss:$9 sm:$0xff] %v642
        %790 = vst [vmem:[%s677] ss:$9 sm:$0xff] %v643
        %791 = vst [vmem:[%s679] ss:$9 sm:$0xff] %v644
        %792 = vst [vmem:[%s681] ss:$9 sm:$0xff] %v645
        %793 = vst [vmem:[%s683] ss:$9 sm:$0xff] %v646
        %794 = vst [vmem:[%s685] ss:$9 sm:$0xff] %v647
        %v795 = vld [vmem:[#allocation1] sm:$0xff]
        %796 = vst [vmem:[#allocation1] ss:$9 sm:$0xff] %v648
        %797 = vst [vmem:[%s673] ss:$9 sm:$0xff] %v649
        %798 = vst [vmem:[%s675] ss:$9 sm:$0xff] %v650
        %799 = vst [vmem:[%s677] ss:$9 sm:$0xff] %v651
        %800 = vst [vmem:[%s679] ss:$9 sm:$0xff] %v652
        %801 = vst [vmem:[%s681] ss:$9 sm:$0xff] %v653
        %802 = vst [vmem:[%s683] ss:$9 sm:$0xff] %v654
        %803 = vst [vmem:[%s685] ss:$9 sm:$0xff] %v655
        %v804 = vld [vmem:[#allocation1] sm:$0xff]
        %805 = vst [vmem:[#allocation1] ss:$9 sm:$0xff] %v656
        %806 = vst [vmem:[%s673] ss:$9 sm:$0xff] %v657
        %807 = vst [vmem:[%s675] ss:$9 sm:$0xff] %v658
        %808 = vst [vmem:[%s677] ss:$9 sm:$0xff] %v659
        %809 = vst [vmem:[%s679] ss:$9 sm:$0xff] %v660
        %810 = vst [vmem:[%s681] ss:$9 sm:$0xff] %v661
        %811 = vst [vmem:[%s683] ss:$9 sm:$0xff] %v662
        %812 = vst [vmem:[%s685] ss:$9 sm:$0xff] %v663
        %v813 = vld [vmem:[#allocation1] sm:$0xff]
        %814 = vst [vmem:[#allocation1] ss:$9 sm:$0xff] %v664
        %815 = vst [vmem:[%s673] ss:$9 sm:$0xff] %v665
        %816 = vst [vmem:[%s675] ss:$9 sm:$0xff] %v666
        %817 = vst [vmem:[%s677] ss:$9 sm:$0xff] %v667
        %818 = vst [vmem:[%s679] ss:$9 sm:$0xff] %v668
        %819 = vst [vmem:[%s681] ss:$9 sm:$0xff] %v669
        %820 = vst [vmem:[%s683] ss:$9 sm:$0xff] %v670
        %821 = vst [vmem:[%s685] ss:$9 sm:$0xff] %v671
        %v822 = vld [vmem:[#allocation1] sm:$0xff]
        %823 = vset.pattern.permute.xlu0 0
        %824 = vperm.xlu0 %823, %v687
        %v825 = vpop.permute.xlu0 %824
        %826 = vset.pattern.permute.xlu0 0
        %827 = vperm.xlu0 %826, %v696
        %v828 = vpop.permute.xlu0 %827
        %829 = vset.pattern.permute.xlu0 0
        %830 = vperm.xlu0 %829, %v705
        %v831 = vpop.permute.xlu0 %830
        %832 = vset.pattern.permute.xlu0 0
        %833 = vperm.xlu0 %832, %v714
        %v834 = vpop.permute.xlu0 %833
        %835 = vset.pattern.permute.xlu0 0
        %836 = vperm.xlu0 %835, %v723
        %v837 = vpop.permute.xlu0 %836
        %838 = vset.pattern.permute.xlu0 0
        %839 = vperm.xlu0 %838, %v732
        %v840 = vpop.permute.xlu0 %839
        %841 = vset.pattern.permute.xlu0 0
        %842 = vperm.xlu0 %841, %v741
        %v843 = vpop.permute.xlu0 %842
        %844 = vset.pattern.permute.xlu0 0
        %845 = vperm.xlu0 %844, %v750
        %v846 = vpop.permute.xlu0 %845
        %847 = vset.pattern.permute.xlu0 0
        %848 = vperm.xlu0 %847, %v759
        %v849 = vpop.permute.xlu0 %848
        %850 = vset.pattern.permute.xlu0 0
        %851 = vperm.xlu0 %850, %v768
        %v852 = vpop.permute.xlu0 %851
        %853 = vset.pattern.permute.xlu0 0
        %854 = vperm.xlu0 %853, %v777
        %v855 = vpop.permute.xlu0 %854
        %856 = vset.pattern.permute.xlu0 0
        %857 = vperm.xlu0 %856, %v786
        %v858 = vpop.permute.xlu0 %857
        %859 = vset.pattern.permute.xlu0 0
        %860 = vperm.xlu0 %859, %v795
        %v861 = vpop.permute.xlu0 %860
        %862 = vset.pattern.permute.xlu0 0
        %863 = vperm.xlu0 %862, %v804
        %v864 = vpop.permute.xlu0 %863
        %865 = vset.pattern.permute.xlu0 0
        %866 = vperm.xlu0 %865, %v813
        %v867 = vpop.permute.xlu0 %866
        %868 = vset.pattern.permute.xlu0 0
        %869 = vperm.xlu0 %868, %v822
        %v870 = vpop.permute.xlu0 %869
        %v871 = vlaneseq
        %v872 = vand.u32 %v871, 127
        %v873 = vperm.slane %v825, %v872
        %v874 = vadd.s32 %v872, 4294967288
        %v875 = vperm.slane %v828, %v874
        %vm876 = vcmask 130112
        %v877 = vsel %vm876, %v875, %v873
        %v878 = vadd.s32 %v872, 4294967280
        %v879 = vperm.slane %v831, %v878
        %vm880 = vcmask 195712
        %v881 = vsel %vm880, %v879, %v877
        %v882 = vadd.s32 %v872, 4294967272
        %v883 = vperm.slane %v834, %v882
        %vm884 = vcmask 261312
        %v885 = vsel %vm884, %v883, %v881
        %v886 = vadd.s32 %v872, 4294967264
        %v887 = vperm.slane %v837, %v886
        %vm888 = vcmask 326912
        %v889 = vsel %vm888, %v887, %v885
        %v890 = vadd.s32 %v872, 4294967256
        %v891 = vperm.slane %v840, %v890
        %vm892 = vcmask 392512
        %v893 = vsel %vm892, %v891, %v889
        %v894 = vadd.s32 %v872, 4294967248
        %v895 = vperm.slane %v843, %v894
        %vm896 = vcmask 458112
        %v897 = vsel %vm896, %v895, %v893
        %v898 = vadd.s32 %v872, 4294967240
        %v899 = vperm.slane %v846, %v898
        %vm900 = vcmask 523712
        %v901 = vsel %vm900, %v899, %v897
        %v902 = vadd.s32 %v872, 4294967232
        %v903 = vperm.slane %v849, %v902
        %vm904 = vcmask 589312
        %v905 = vsel %vm904, %v903, %v901
        %v906 = vadd.s32 %v872, 4294967224
        %v907 = vperm.slane %v852, %v906
        %vm908 = vcmask 654912
        %v909 = vsel %vm908, %v907, %v905
        %v910 = vadd.s32 %v872, 4294967216
        %v911 = vperm.slane %v855, %v910
        %vm912 = vcmask 720512
        %v913 = vsel %vm912, %v911, %v909
        %v914 = vadd.s32 %v872, 4294967208
        %v915 = vperm.slane %v858, %v914
        %vm916 = vcmask 786112
        %v917 = vsel %vm916, %v915, %v913
        %v918 = vadd.s32 %v872, 4294967200
        %v919 = vperm.slane %v861, %v918
        %vm920 = vcmask 851712
        %v921 = vsel %vm920, %v919, %v917
        %v922 = vadd.s32 %v872, 4294967192
        %v923 = vperm.slane %v864, %v922
        %vm924 = vcmask 917312
        %v925 = vsel %vm924, %v923, %v921
        %v926 = vadd.s32 %v872, 4294967184
        %v927 = vperm.slane %v867, %v926
        %vm928 = vcmask 982912
        %v929 = vsel %vm928, %v927, %v925
        %v930 = vadd.s32 %v872, 4294967176
        %v931 = vperm.slane %v870, %v930
        %vm932 = vcmask 1048512
        %v933 = vsel %vm932, %v931, %v929
        %v935 = vsel %vm527, %v933, -1e+12
        %936 = vst [vmem:[%s271] sm:$0x1] %v935
        %s937 = sand.u32 %s165, 1
        %s938 = scalar_lea.sflag [#allocation3], %s937
        %s939 = sand.u32 %s165, 1
        %s940 = scalar_lea.vmem [#allocation2], %s939
        // Predicated region
        $region41: #{tpu_custom_call.1} parent=39 // pred_check
          %p941 = pneg %p175
        $region42: #{tpu_custom_call.1} parent=39 // pred_check_branch
          %943 = sbr.rel (%p941) target = $region44
        $region43: #{tpu_custom_call.1} parent=39 // pred_region
          %945 = vsyncadd %s938, 0
          %s946 = sadd.s32 %s24, %s23
          %s947 = scalar_lea.hbm %s5, %s946
          %s949 = sshll.u32 %s940, 4
          %s950 = int_to_ptr.vmem [resolvable:$true] %s949
          %s951 = sshll.u32 %s947, 4
          %s952 = int_to_ptr.hbm [resolvable:$true] %s951
          %954 = dma.vmem_to_hbm [thread:$0]  %s950, 16, %s952, %s938
        $region44: #{tpu_custom_call.1} parent=39 // pred_fallthru
          _
      $region40: #{tpu_custom_call.1} parent=5 // pred_fallthru
        _
      %p955 = scmp.le.s32.totalorder 2, %s14
      // Predicated region
      $region45: #{tpu_custom_call.1} parent=5 // pred_check
        %p956 = pneg %p955
      $region46: #{tpu_custom_call.1} parent=5 // pred_check_branch
        %958 = sbr.rel (%p956) target = $region48
      $region47: #{tpu_custom_call.1} parent=5 // pred_region
        %s959 = ssub.s32 %s14, 2
        // Predicated region
        $region49: #{tpu_custom_call.1} parent=47 // pred_check
          %p960 = pneg %p181
        $region50: #{tpu_custom_call.1} parent=47 // pred_check_branch
          %962 = sbr.rel (%p960) target = $region52
        $region51: #{tpu_custom_call.1} parent=47 // pred_region
          %s963 = sand.u32 %s166, 1
          %s964 = scalar_lea.sflag [#allocation3], %s963
          %s965 = sand.u32 %s166, 1
          %s966 = scalar_lea.vmem [#allocation2], %s965
          %968 = dma.done %s964, 16
        $region52: #{tpu_custom_call.1} parent=47 // pred_fallthru
          _
      $region48: #{tpu_custom_call.1} parent=5 // pred_fallthru
        _
    $region6: #{tpu_custom_call.1} parent=1 // loop_footer
      %s18 = sadd.s32 1, %s14
    $region7: #{tpu_custom_call.1} parent=1 // loop_footer_branch
      %13 = sbr.rel target = $region3
    $region8: #{tpu_custom_call.1} parent=1 // loop_exit
      _
    %969 = vsyncpa [#allocation3], 1
    %s970 = scalar_lea.sflag [#allocation3], 1
    %971 = vsyncpa %s970, 1

</llo_original>
